<compile_context>
chip_gen: v6e
topology: v6e:2x2x1
jax: 0.10.0
libtpu: 0.0.40
codegen_flags: <defaults>
</compile_context>

<pallas_src>
import functools

import jax
import jax.numpy as jnp
from jax.experimental import pallas as pl
from jax.experimental.pallas import tpu as pltpu

_LANES = 128
_FOLD = 64                              # accumulator slab rows (8 f32 vregs)
_TARGET_BLOCK_BYTES = 4 * 1024 * 1024   # per input, per grid step
_VMEM_LIMIT_BYTES = 48 * 1024 * 1024    # 2 in x 2 bufs x 4 MiB << 48 MiB


def _charbonnier_block_kernel(x_ref, y_ref, o_ref, *, eps, rows, block_rows,
                              blocks_per_core, masked):
    i = pl.program_id(1)                # reduction axis

    @pl.when(i == 0)
    def _():
        o_ref[...] = jnp.zeros_like(o_ref)

    x = x_ref[...]
    y = y_ref[...]
    if x.dtype != jnp.float32:
        x = x.astype(jnp.float32)
    if y.dtype != jnp.float32:
        y = y.astype(jnp.float32)

    diff = x - y
    val = jnp.sqrt(diff * diff + jnp.float32(eps))

    if masked:
        # Zero rows beyond the valid row count: covers the partial tail block
        # and the clamped dummy block used to even out the per-core block count.
        g = pl.program_id(0) * blocks_per_core + i      # logical block index
        valid = rows - g * block_rows                   # may be <= 0 (dummy)
        row_ids = jax.lax.broadcasted_iota(jnp.int32, val.shape, 0)
        val = jnp.where(row_ids < valid, val, 0.0)

    if block_rows == _FOLD:
        o_ref[...] += val
    else:
        # Fold (block_rows, 128) into a (64, 128) slab: 8 independent
        # accumulation chains keep the 4 VALU slots busy; final reduce of the
        # tiny slab is deferred to the wrapper.
        o_ref[...] += val.reshape(-1, _FOLD, _LANES).sum(axis=0)


def _charbonnier_small_kernel(x_ref, y_ref, o_ref, *, eps):
    # Tiny-input path (rows < 64): single full-array block, no accumulator.
    diff = x_ref[...].astype(jnp.float32) - y_ref[...].astype(jnp.float32)
    o_ref[...] = jnp.sqrt(diff * diff + jnp.float32(eps))


def charbonnier_loss(x, y, eps=1e-6):
    assert x.shape == y.shape
    n = x.size
    if n == 0:
        return jnp.float32(0.0)

    itemsize = jnp.dtype(x.dtype).itemsize

    xf = x.reshape(-1)
    yf = y.reshape(-1)

    lane_pad = (-n) % _LANES
    if lane_pad:
        # TODO(synk): only numel % 128 != 0 shapes pay this (tiny, <128-elem)
        # pad, which still materializes one copy of each input; 128-aligned
        # sizes (the common case) go straight through with a free reshape.
        xf = jnp.pad(xf, (0, lane_pad))
        yf = jnp.pad(yf, (0, lane_pad))
    rows = (n + lane_pad) // _LANES
    x2 = xf.reshape(rows, _LANES)
    y2 = yf.reshape(rows, _LANES)

    if rows < _FOLD:
        # Tiny path: a single (rows, 128) block, summed in the wrapper.
        out = pl.pallas_call(
            functools.partial(_charbonnier_small_kernel, eps=float(eps)),
            out_shape=jax.ShapeDtypeStruct((rows, _LANES), jnp.float32),
        )(x2, y2)
        loss = jnp.sum(out)
    else:
        # Bytes-based, dtype-aware block sizing (multiple of _FOLD rows).
        target_rows = (_TARGET_BLOCK_BYTES // (itemsize * _LANES)) // _FOLD * _FOLD
        block_rows = min(target_rows, (rows // _FOLD) * _FOLD)
        real_blocks = pl.cdiv(rows, block_rows)

        if real_blocks >= 2:
            n_split = 2                       # v7x megacore split
            blocks_per_core = pl.cdiv(real_blocks, 2)
        else:
            n_split = 1
            blocks_per_core = 1
        total_blocks = n_split * blocks_per_core
        masked = total_blocks * block_rows > rows

        if total_blocks > real_blocks:
            # Odd block count: clamp the dummy step onto the last real block
            # (its contribution is fully masked out in the kernel).
            in_map = lambda c, i: (jnp.minimum(c * blocks_per_core + i,
                                               real_blocks - 1), 0)
        else:
            in_map = lambda c, i: (c * blocks_per_core + i, 0)

        kernel = functools.partial(
            _charbonnier_block_kernel, eps=float(eps), rows=rows,
            block_rows=block_rows, blocks_per_core=blocks_per_core,
            masked=masked)

        partials = pl.pallas_call(
            kernel,
            out_shape=jax.ShapeDtypeStruct((n_split * _FOLD, _LANES),
                                           jnp.float32),
            grid_spec=pltpu.PrefetchScalarGridSpec(
                num_scalar_prefetch=0,
                grid=(n_split, blocks_per_core),
                in_specs=[
                    pl.BlockSpec((block_rows, _LANES), in_map),
                    pl.BlockSpec((block_rows, _LANES), in_map),
                ],
                out_specs=pl.BlockSpec((_FOLD, _LANES), lambda c, i: (c, 0)),
            ),
            compiler_params=pltpu.CompilerParams(
                dimension_semantics=("parallel", "arbitrary"),
                vmem_limit_bytes=_VMEM_LIMIT_BYTES,
            ),
        )(x2, y2)
        loss = jnp.sum(partials)

    if lane_pad:
        # Each zero-padded element of both inputs contributed exactly sqrt(eps).
        loss = loss - jnp.float32(lane_pad) * jnp.sqrt(jnp.float32(eps))
    return loss


def _ref_loss(x, y, eps=1e-6):
    d = x.astype(jnp.float32) - y.astype(jnp.float32)
    return jnp.sum(jnp.sqrt(d * d + jnp.float32(eps)))


if __name__ == "__main__":
    key = jax.random.PRNGKey(0)
    kx, ky = jax.random.split(key)

    def check(shape, dtype=jnp.float32, eps=1e-6):
        xx = jax.random.normal(kx, shape, dtype=jnp.float32).astype(dtype)
        yy = jax.random.normal(ky, shape, dtype=jnp.float32).astype(dtype)
        out = charbonnier_loss(xx, yy, eps=eps)
        jax.block_until_ready(out)
        ref = _ref_loss(xx, yy, eps)
        rel = abs(float(out) - float(ref)) / max(abs(float(ref)), 1e-12)
        assert rel < 1e-4, (shape, str(dtype), float(out), float(ref), rel)

    # Module-style NCHW input (tiny path: rows < 64).
    check((2, 4, 16, 16))
    # Ragged numel (not a multiple of 128): lane-pad correction + masked tail.
    check((2, 3, 300, 301))
    # Two full 4 MiB blocks -> 2-way "parallel" core split, no masking.
    check((8, 16, 128, 128))
    # Odd real block count -> clamped, fully-masked dummy block (even split).
    check((5, 8, 128, 512))
    # bf16 inputs exercise the dtype-aware (bytes-based) block sizing.
    check((4, 8, 128, 128), dtype=jnp.bfloat16)

    print("KERNEL_OK")
</pallas_src>

<mosaic_0001>
module attributes {stable_mosaic.version = 11 : i64} {
  func.func @_charbonnier_small_kernel(%arg0: memref<16x128xf32, #tpu.memory_space<vmem>>, %arg1: memref<16x128xf32, #tpu.memory_space<vmem>>, %arg2: memref<16x128xf32, #tpu.memory_space<vmem>>) attributes {dimension_semantics = [], scalar_prefetch = 0 : i64, scratch_operands = 0 : i64, tpu.core_type = #tpu.core_type<tc>} {
    %c0 = arith.constant 0 : index
    %c0_0 = arith.constant 0 : index
    %0 = vector.load %arg0[%c0, %c0_0] : memref<16x128xf32, #tpu.memory_space<vmem>>, vector<16x128xf32>
    %c0_1 = arith.constant 0 : index
    %c0_2 = arith.constant 0 : index
    %1 = vector.load %arg1[%c0_1, %c0_2] : memref<16x128xf32, #tpu.memory_space<vmem>>, vector<16x128xf32>
    %2 = arith.subf %0, %1 : vector<16x128xf32>
    %3 = arith.mulf %2, %2 : vector<16x128xf32>
    %cst = arith.constant 9.99999997E-7 : f32
    %4 = vector.broadcast %cst : f32 to vector<16x128xf32>
    %5 = arith.addf %3, %4 : vector<16x128xf32>
    %6 = math.sqrt %5 : vector<16x128xf32>
    %c0_3 = arith.constant 0 : index
    %c0_4 = arith.constant 0 : index
    %7 = vector.load %arg2[%c0_3, %c0_4] : memref<16x128xf32, #tpu.memory_space<vmem>>, vector<16x128xf32>
    tpu.vector_store %arg2[%c0_3, %c0_4], %6 {strides = array<i32>} : memref<16x128xf32, #tpu.memory_space<vmem>>, vector<16x128xf32>,
    return
  }
}

</mosaic_0001>

<llo_original>
// kernel: tpu_custom_call.1
$region0: #{tpu_custom_call.1}
  #allocation0 [shape = 'u32[]', space=smem, size = 0x4, offset = 0x4, fixed_abs, tag = 'smem constant byte address 0x4 - core index']
  #allocation1 [shape = 'u32[144,128]{1,0:T(1,128)}', space=vmem, size = 0x12000, scoped, tag = 'internal scratch']
  %s0 = inlined_call_operand.hbm [shape: f32[16,128], index: 0, kind: input, shape index: {}]
  %s1 = inlined_call_operand.hbm [shape: f32[16,128], index: 1, kind: input, shape index: {}]
  %s2 = inlined_call_operand.hbm [shape: f32[16,128], index: 2, kind: output, shape index: {}]
  %s3 = sld [smem:[#allocation0]]
  $region26: #{tpu_custom_call.1} parent=0
    _
  %s5 = ssub.s32 1, %s3
  %s6 = scalar_select 0, %s5, %s3
  $region1: #{tpu_custom_call.1} parent=0
    #allocation2 [shape = 'u8[8192]{0}', space=vmem, size = 0x2000, scoped, tag = 'input window, operand 0, single buffered']
    #allocation3 [shape = 's32[1]{0}', space=sflag, size = 0x4, scoped, tag = 'scoped memory for tpu_custom_call.1']
    #allocation4 [shape = 's32[1]{0}', space=sflag, size = 0x4, scoped, tag = 'scoped memory for tpu_custom_call.1']
    #allocation5 [shape = 'u8[8192]{0}', space=vmem, size = 0x2000, scoped, tag = 'input window, operand 1, single buffered']
    #allocation6 [shape = 's32[1]{0}', space=sflag, size = 0x4, scoped, tag = 'scoped memory for tpu_custom_call.1']
    #allocation7 [shape = 'u8[8192]{0}', space=vmem, size = 0x2000, scoped, tag = 'output window, operand 0, single buffered']
    %7 = vsyncpa [#allocation3], 0
    %8 = vsyncpa [#allocation6], 0
    %9 = vsyncpa [#allocation4], 0
    // Predicated region
    $region2: #{tpu_custom_call.1} parent=1 // pred_check
      _
    $region3: #{tpu_custom_call.1} parent=1 // pred_check_branch
      %11 = sbr.rel (0) target = $region5
    $region4: #{tpu_custom_call.1} parent=1 // pred_region
      %s13 = ssub.s32 256, 256
      %14 = vsyncadd [#allocation3], %s13
      %s15 = sshll.u32 [#allocation2], 4
      %s16 = int_to_ptr.vmem [resolvable:$true] %s15
      %21 = dma.hbm_to_vmem [thread:$0]  %s0, 256, %s16, [#allocation3], 128, 128, 8
    $region5: #{tpu_custom_call.1} parent=1 // pred_fallthru
      _
    // Predicated region
    $region6: #{tpu_custom_call.1} parent=1 // pred_check
      _
    $region7: #{tpu_custom_call.1} parent=1 // pred_check_branch
      %23 = sbr.rel (0) target = $region9
    $region8: #{tpu_custom_call.1} parent=1 // pred_region
      %s25 = ssub.s32 256, 256
      %26 = vsyncadd [#allocation6], %s25
      %s27 = sshll.u32 [#allocation5], 4
      %s28 = int_to_ptr.vmem [resolvable:$true] %s27
      %33 = dma.hbm_to_vmem [thread:$0]  %s1, 256, %s28, [#allocation6], 128, 128, 8
    $region9: #{tpu_custom_call.1} parent=1 // pred_fallthru
      _
    // Predicated region
    $region10: #{tpu_custom_call.1} parent=1 // pred_check
      _
    $region11: #{tpu_custom_call.1} parent=1 // pred_check_branch
      %35 = sbr.rel (0) target = $region13
    $region12: #{tpu_custom_call.1} parent=1 // pred_region
      %36 = dma.done [#allocation3], 256
    $region13: #{tpu_custom_call.1} parent=1 // pred_fallthru
      _
    // Predicated region
    $region14: #{tpu_custom_call.1} parent=1 // pred_check
      _
    $region15: #{tpu_custom_call.1} parent=1 // pred_check_branch
      %38 = sbr.rel (0) target = $region17
    $region16: #{tpu_custom_call.1} parent=1 // pred_region
      %39 = dma.done [#allocation6], 256
    $region17: #{tpu_custom_call.1} parent=1 // pred_fallthru
      _
    %v40 = vld [vmem:[#allocation2] sm:$0xff]
    %v41 = vld [vmem:[#allocation2 + $0x8] sm:$0xff]
    %v42 = vld [vmem:[#allocation5] sm:$0xff]
    %v43 = vld [vmem:[#allocation5 + $0x8] sm:$0xff]
    %v44 = vsub.f32 %v40, %v42
    %v45 = vsub.f32 %v41, %v43
    %v46 = vmul.f32 %v44, %v44
    %v47 = vmul.f32 %v45, %v45
    %v48 = vadd.f32 %v46, 1e-06
    %v49 = vadd.f32 %v47, 1e-06
    %v50 = vrsqrt.pop %v48
    %v51 = vmul.f32 %v48, %v50
    %vm52 = vcmp.eq.f32.partialorder %v48, inf
    %v53 = vsel %vm52, %v48, %v51
    %vm54 = vcmp.eq.f32.partialorder %v48, 0.0
    %v55 = vand.u32 %v48, 2147483648
    %v56 = vsel %vm54, %v55, %v53
    %v57 = vrsqrt.pop %v49
    %v58 = vmul.f32 %v49, %v57
    %vm59 = vcmp.eq.f32.partialorder %v49, inf
    %v60 = vsel %vm59, %v49, %v58
    %vm61 = vcmp.eq.f32.partialorder %v49, 0.0
    %v62 = vand.u32 %v49, 2147483648
    %v63 = vsel %vm61, %v62, %v60
    %64 = vst [vmem:[#allocation7] sm:$0xff] %v56
    %65 = vst [vmem:[#allocation7 + $0x8] sm:$0xff] %v63
    // Predicated region
    $region18: #{tpu_custom_call.1} parent=1 // pred_check
      _
    $region19: #{tpu_custom_call.1} parent=1 // pred_check_branch
      %67 = sbr.rel (0) target = $region21
    $region20: #{tpu_custom_call.1} parent=1 // pred_region
      %s69 = ssub.s32 256, 256
      %70 = vsyncadd [#allocation4], %s69
      %s71 = sshll.u32 [#allocation7], 4
      %s72 = int_to_ptr.vmem [resolvable:$true] %s71
      %77 = dma.vmem_to_hbm [thread:$0]  %s72, 256, %s2, [#allocation4], 128, 128, 8
    $region21: #{tpu_custom_call.1} parent=1 // pred_fallthru
      _
    // Predicated region
    $region22: #{tpu_custom_call.1} parent=1 // pred_check
      _
    $region23: #{tpu_custom_call.1} parent=1 // pred_check_branch
      %79 = sbr.rel (0) target = $region25
    $region24: #{tpu_custom_call.1} parent=1 // pred_region
      %80 = dma.done [#allocation4], 256
    $region25: #{tpu_custom_call.1} parent=1 // pred_fallthru
      _
    %81 = vsyncpa [#allocation3], 1
    %82 = vsyncpa [#allocation6], 1
    %83 = vsyncpa [#allocation4], 1

</llo_original>
